<compile_context>
chip_gen: v7x
topology: tpu7x:2x2x1
jax: 0.10.0
libtpu: 0.0.40
codegen_flags: <defaults>
</compile_context>

<pallas_src>
import jax
import jax.numpy as jnp
from jax.experimental import pallas as pl
from jax.experimental.pallas import tpu as pltpu


def _round_up(x, m):
    return (x + m - 1) // m * m


def _mlp_kernel(x_ref, w1_ref, b1_ref, w2_ref, b2_ref, out_ref):
    # x_ref:  (TB, n_pixels)  f32 batch tile (pipelined over the grid)
    # w1_ref: (256, n_pixels) f32, PyTorch (out, in) layout, resident across tiles
    # b1_ref: (1, 256)
    # w2_ref: (1, 256)        PyTorch (out=1, in) layout
    # b2_ref: (1, 1)          SMEM scalar
    # out_ref:(TB, 1)
    x = x_ref[...]

    # fc1: contract x's pixel dim against W1's pixel dim (== x @ W1^T) on the
    # MXU with f32 accumulation; avoids materializing W1^T in the wrapper.
    h = jax.lax.dot_general(
        x, w1_ref[...],
        dimension_numbers=(((1,), (1,)), ((), ())),
        preferred_element_type=jnp.float32)
    h = jnp.maximum(h + b1_ref[...], 0.0)

    # fc2 (single output unit): an N=1 MXU matmul wastes the systolic array and
    # serializes in the MXU result FIFO, so do it on the VPU + XLU lane-reduce:
    #   y[b] = sum_k h[b, k] * w2[0, k] + b2
    y = jnp.sum(h * w2_ref[...], axis=-1, keepdims=True) + b2_ref[0, 0]
    out_ref[...] = y.astype(out_ref.dtype)


def baseline_learner_forward(image, w1, b1, w2, b2, *, block_b=512):
    """image: (B, 1, slen, slen) NCHW float32.
    w1: (256, n_pixels), b1: (256,), w2: (1, 256), b2: (1,)  -- PyTorch Linear layout.
    Returns (B, 1) float32 logits (same as the PyTorch forward)."""
    B = image.shape[0]
    n_pixels = image.shape[-1] * image.shape[-2]
    hidden = w1.shape[0]

    x = image.reshape(B, n_pixels).astype(jnp.float32)  # == torch .view(-1, n_pixels)

    # Batch tile: multiple of 256 for big batches (full MXU column occupancy on
    # v6e/v7x); tiny batches just use one 8-row-aligned tile.
    tb = min(block_b, _round_up(B, 8))
    b_pad = _round_up(B, tb)
    if b_pad != B:
        x = jnp.pad(x, ((0, b_pad - B), (0, 0)))
    grid = (b_pad // tb,)

    w1_f = w1.astype(jnp.float32)
    b1_2d = b1.reshape(1, hidden).astype(jnp.float32)
    w2_2d = w2.reshape(1, hidden).astype(jnp.float32)
    b2_2d = b2.reshape(1, 1).astype(jnp.float32)

    flops = 2 * b_pad * hidden * (n_pixels + 1)
    bytes_accessed = 4 * (b_pad * n_pixels + hidden * n_pixels + 2 * hidden + 1 + b_pad)

    out = pl.pallas_call(
        _mlp_kernel,
        out_shape=jax.ShapeDtypeStruct((b_pad, 1), jnp.float32),
        grid=grid,
        in_specs=[
            pl.BlockSpec((tb, n_pixels), lambda i: (i, 0)),      # x: per-tile, pipelined
            pl.BlockSpec((hidden, n_pixels), lambda i: (0, 0)),  # W1: resident
            pl.BlockSpec((1, hidden), lambda i: (0, 0)),         # b1: resident
            pl.BlockSpec((1, hidden), lambda i: (0, 0)),         # w2: resident
            pl.BlockSpec(memory_space=pltpu.MemorySpace.SMEM),   # b2: SMEM scalar
        ],
        out_specs=pl.BlockSpec((tb, 1), lambda i: (i, 0)),
        compiler_params=pltpu.CompilerParams(
            dimension_semantics=("parallel",)),
        cost_estimate=pl.CostEstimate(
            flops=flops, transcendentals=0, bytes_accessed=bytes_accessed),
    )(x, w1_f, b1_2d, w2_2d, b2_2d)

    return out[:B]


def _ref_forward(image, w1, b1, w2, b2):
    B = image.shape[0]
    x = image.reshape(B, -1)
    h = jnp.maximum(x @ w1.T + b1, 0.0)
    return h @ w2.T + b2


if __name__ == "__main__":
    # Small shapes consistent with the module: slen=16 -> n_pixels=256, hidden=256, out=1.
    slen = 16
    n_pixels = slen * slen
    hidden = 256
    B = 2

    key = jax.random.PRNGKey(0)
    k_img, k_w1, k_b1, k_w2, k_b2 = jax.random.split(key, 5)

    image = jax.random.normal(k_img, (B, 1, slen, slen), dtype=jnp.float32)

    # Deterministic parameter init (mimicking nn.Linear uniform fan-in scaling).
    bound1 = 1.0 / jnp.sqrt(n_pixels)
    w1 = jax.random.uniform(k_w1, (hidden, n_pixels), minval=-bound1, maxval=bound1,
                            dtype=jnp.float32)
    b1 = jax.random.uniform(k_b1, (hidden,), minval=-bound1, maxval=bound1,
                            dtype=jnp.float32)
    bound2 = 1.0 / jnp.sqrt(hidden)
    w2 = jax.random.uniform(k_w2, (1, hidden), minval=-bound2, maxval=bound2,
                            dtype=jnp.float32)
    b2 = jax.random.uniform(k_b2, (1,), minval=-bound2, maxval=bound2,
                            dtype=jnp.float32)

    # Tiny-batch path (grid of 1 tile, padded to 8 rows).
    out = baseline_learner_forward(image, w1, b1, w2, b2)
    out = jax.block_until_ready(out)
    ref = _ref_forward(image, w1, b1, w2, b2)
    assert out.shape == (B, 1), out.shape
    assert jnp.allclose(out, ref, atol=1e-4, rtol=1e-4), (out, ref)

    # Multi-tile pipelined path (grid > 1, with batch padding).
    B2 = 300
    image2 = jax.random.normal(jax.random.PRNGKey(1), (B2, 1, slen, slen),
                               dtype=jnp.float32)
    out2 = baseline_learner_forward(image2, w1, b1, w2, b2, block_b=128)
    out2 = jax.block_until_ready(out2)
    ref2 = _ref_forward(image2, w1, b1, w2, b2)
    assert out2.shape == (B2, 1), out2.shape
    assert jnp.allclose(out2, ref2, atol=1e-4, rtol=1e-4)

    print("KERNEL_OK")
</pallas_src>

<mosaic_0001>
module attributes {stable_mosaic.version = 11 : i64} {
  func.func @_mlp_kernel(%arg0: i32, %arg1: memref<8x256xf32, #tpu.memory_space<vmem>>, %arg2: memref<256x256xf32, #tpu.memory_space<vmem>>, %arg3: memref<1x256xf32, #tpu.memory_space<vmem>>, %arg4: memref<1x256xf32, #tpu.memory_space<vmem>>, %arg5: memref<1x1xf32, #tpu.memory_space<smem>>, %arg6: memref<8x1xf32, #tpu.memory_space<vmem>>) attributes {dimension_semantics = [#tpu.dimension_semantics<parallel>], iteration_bounds = array<i64: 1>, scalar_prefetch = 0 : i64, scratch_operands = 0 : i64, tpu.core_type = #tpu.core_type<tc>, window_params = [{transform_indices = @transform_0, window_bounds = array<i64: 8, 256>}, {pipeline_mode = #tpu.pipeline_mode<synchronous>, transform_indices = @transform_1, window_bounds = array<i64: 256, 256>}, {pipeline_mode = #tpu.pipeline_mode<synchronous>, transform_indices = @transform_2, window_bounds = array<i64: 1, 256>}, {pipeline_mode = #tpu.pipeline_mode<synchronous>, transform_indices = @transform_3, window_bounds = array<i64: 1, 256>}, {transform_indices = @transform_4, window_bounds = array<i64: 1, 1>}, {transform_indices = @transform_5, window_bounds = array<i64: 8, 1>}]} {
    %c0 = arith.constant 0 : index
    %c0_0 = arith.constant 0 : index
    %0 = vector.load %arg1[%c0, %c0_0] : memref<8x256xf32, #tpu.memory_space<vmem>>, vector<8x256xf32>
    %c0_1 = arith.constant 0 : index
    %c0_2 = arith.constant 0 : index
    %1 = vector.load %arg2[%c0_1, %c0_2] : memref<256x256xf32, #tpu.memory_space<vmem>>, vector<256x256xf32>
    %cst = arith.constant dense<0.000000e+00> : vector<8x256xf32>
    %2 = tpu.matmul %0, %1, %cst {dimension_numbers = #tpu.dot_dimension_numbers<[1], [1], [0], [0], [0, 0, 1, 0], [], []>} : vector<8x256xf32>, vector<256x256xf32>, vector<8x256xf32> -> vector<8x256xf32>
    %c0_3 = arith.constant 0 : index
    %c0_4 = arith.constant 0 : index
    %3 = vector.load %arg3[%c0_3, %c0_4] : memref<1x256xf32, #tpu.memory_space<vmem>>, vector<1x256xf32>
    %4 = vector.broadcast %3 : vector<1x256xf32> to vector<8x256xf32>
    %5 = arith.addf %2, %4 : vector<8x256xf32>
    %cst_5 = arith.constant 0.000000e+00 : f32
    %6 = vector.broadcast %cst_5 : f32 to vector<8x256xf32>
    %7 = arith.maximumf %5, %6 : vector<8x256xf32>
    %c0_6 = arith.constant 0 : index
    %c0_7 = arith.constant 0 : index
    %8 = vector.load %arg4[%c0_6, %c0_7] : memref<1x256xf32, #tpu.memory_space<vmem>>, vector<1x256xf32>
    %9 = vector.broadcast %8 : vector<1x256xf32> to vector<8x256xf32>
    %10 = arith.mulf %7, %9 : vector<8x256xf32>
    %cst_8 = arith.constant dense<0.000000e+00> : vector<8xf32>
    %11 = vector.multi_reduction <add>, %10, %cst_8 [1] : vector<8x256xf32> to vector<8xf32>
    %12 = vector.shape_cast %11 : vector<8xf32> to vector<8x1xf32>
    %c0_9 = arith.constant 0 : index
    %c0_10 = arith.constant 0 : index
    %13 = memref.load %arg5[%c0_9, %c0_10] : memref<1x1xf32, #tpu.memory_space<smem>>
    %14 = vector.broadcast %13 : f32 to vector<8x1xf32>
    %15 = arith.addf %12, %14 : vector<8x1xf32>
    %c0_11 = arith.constant 0 : index
    %c0_12 = arith.constant 0 : index
    %16 = vector.load %arg6[%c0_11, %c0_12] : memref<8x1xf32, #tpu.memory_space<vmem>>, vector<8x1xf32>
    tpu.vector_store %arg6[%c0_11, %c0_12], %15 {strides = array<i32>} : memref<8x1xf32, #tpu.memory_space<vmem>>, vector<8x1xf32>,
    return
  }
  func.func @transform_0(%arg0: i32) -> (i32, i32) {
    %c0_i32 = arith.constant 0 : i32
    %c0_i32_0 = arith.constant 0 : i32
    return %arg0, %c0_i32 : i32, i32
  }
  func.func @transform_1(%arg0: i32) -> (i32, i32) {
    %c0_i32 = arith.constant 0 : i32
    %c0_i32_0 = arith.constant 0 : i32
    %c0_i32_1 = arith.constant 0 : i32
    return %c0_i32, %c0_i32_0 : i32, i32
  }
  func.func @transform_2(%arg0: i32) -> (i32, i32) {
    %c0_i32 = arith.constant 0 : i32
    %c0_i32_0 = arith.constant 0 : i32
    %c0_i32_1 = arith.constant 0 : i32
    return %c0_i32, %c0_i32_0 : i32, i32
  }
  func.func @transform_3(%arg0: i32) -> (i32, i32) {
    %c0_i32 = arith.constant 0 : i32
    %c0_i32_0 = arith.constant 0 : i32
    %c0_i32_1 = arith.constant 0 : i32
    return %c0_i32, %c0_i32_0 : i32, i32
  }
  func.func @transform_4(%arg0: i32) -> (i32, i32) {
    %c0_i32 = arith.constant 0 : i32
    %c0_i32_0 = arith.constant 0 : i32
    %c0_i32_1 = arith.constant 0 : i32
    return %c0_i32, %c0_i32_0 : i32, i32
  }
  func.func @transform_5(%arg0: i32) -> (i32, i32) {
    %c0_i32 = arith.constant 0 : i32
    %c0_i32_0 = arith.constant 0 : i32
    return %arg0, %c0_i32 : i32, i32
  }
}

</mosaic_0001>

<llo_original>
// kernel: tpu_custom_call.1
$region0: #{tpu_custom_call.1}
  #allocation0 [shape = 'u32[]', space=smem, size = 0x4, offset = 0x4, fixed_abs, tag = 'smem constant byte address 0x4 - core index']
  #allocation1 [shape = 'u32[144,128]{1,0:T(1,128)}', space=vmem, size = 0x12000, scoped, tag = 'internal scratch']
  #allocation2 [shape = 'f32[1,1]{1,0:T(1,128)S(6)}', space=smem, size = 0x200, scoped, tag = 'scoped memory for tpu_custom_call.1']
  %s0 = inlined_call_operand.hbm [shape: f32[8,256], index: 0, kind: input, shape index: {}]
  %s1 = inlined_call_operand.hbm [shape: f32[256,256], index: 1, kind: input, shape index: {}]
  %s2 = inlined_call_operand.vmem [shape: f32[1,256], index: 2, kind: input, shape index: {}]
  %s3 = inlined_call_operand.vmem [shape: f32[1,256], index: 3, kind: input, shape index: {}]
  %s4 = inlined_call_operand.<no memory space> [shape: f32[1,1], index: 4, kind: input, shape index: {}]
  %s5 = inlined_call_operand.vmem [shape: f32[8,1], index: 5, kind: output, shape index: {}]
  %s6 = sld [smem:[#allocation0]]
  $region38: #{tpu_custom_call.1} parent=0
    _
  %s8 = ssub.s32 1, %s6
  %s9 = scalar_select 0, %s8, %s6
  %10 = sst [smem:[#allocation2]] %s4
  $region1: #{tpu_custom_call.1} parent=0
    #allocation3 [shape = 'u8[8192]{0}', space=vmem, size = 0x2000, scoped, tag = 'input window, operand 0, single buffered']
    #allocation4 [shape = 's32[1]{0}', space=sflag, size = 0x4, scoped, tag = 'scoped memory for tpu_custom_call.1']
    #allocation5 [shape = 'u8[262144]{0}', space=vmem, size = 0x40000, scoped, tag = 'input window, operand 1, single buffered']
    #allocation6 [shape = 's32[1]{0}', space=sflag, size = 0x4, scoped, tag = 'scoped memory for tpu_custom_call.1']
    %11 = vsyncpa [#allocation4], 0
    %12 = vsyncpa [#allocation6], 0
    // Predicated region
    $region2: #{tpu_custom_call.1} parent=1 // pred_check
      _
    $region3: #{tpu_custom_call.1} parent=1 // pred_check_branch
      %14 = sbr.rel (0) target = $region5
    $region4: #{tpu_custom_call.1} parent=1 // pred_region
      %s16 = ssub.s32 256, 256
      %17 = vsyncadd [#allocation4], %s16
      %s19 = sshll.u32 [#allocation3], 4
      %s20 = int_to_ptr.vmem [resolvable:$true] %s19
      %22 = dma.hbm_to_vmem [thread:$0]  %s0, 256, %s20, [#allocation4]
    $region5: #{tpu_custom_call.1} parent=1 // pred_fallthru
      _
    // Predicated region
    $region6: #{tpu_custom_call.1} parent=1 // pred_check
      _
    $region7: #{tpu_custom_call.1} parent=1 // pred_check_branch
      %24 = sbr.rel (0) target = $region9
    $region8: #{tpu_custom_call.1} parent=1 // pred_region
      %s26 = ssub.s32 8192, 8192
      %27 = vsyncadd [#allocation6], %s26
      %s28 = sshll.u32 [#allocation5], 4
      %s29 = int_to_ptr.vmem [resolvable:$true] %s28
      %34 = dma.hbm_to_vmem [thread:$0]  %s1, 8192, %s29, [#allocation6], 256, 256, 16
    $region9: #{tpu_custom_call.1} parent=1 // pred_fallthru
      _
    // Predicated region
    $region10: #{tpu_custom_call.1} parent=1 // pred_check
      _
    $region11: #{tpu_custom_call.1} parent=1 // pred_check_branch
      %36 = sbr.rel (0) target = $region13
    $region12: #{tpu_custom_call.1} parent=1 // pred_region
      _
    $region13: #{tpu_custom_call.1} parent=1 // pred_fallthru
      _
    // Predicated region
    $region14: #{tpu_custom_call.1} parent=1 // pred_check
      _
    $region15: #{tpu_custom_call.1} parent=1 // pred_check_branch
      %38 = sbr.rel (0) target = $region17
    $region16: #{tpu_custom_call.1} parent=1 // pred_region
      _
    $region17: #{tpu_custom_call.1} parent=1 // pred_fallthru
      _
    // Predicated region
    $region18: #{tpu_custom_call.1} parent=1 // pred_check
      _
    $region19: #{tpu_custom_call.1} parent=1 // pred_check_branch
      %40 = sbr.rel (0) target = $region21
    $region20: #{tpu_custom_call.1} parent=1 // pred_region
      _
    $region21: #{tpu_custom_call.1} parent=1 // pred_fallthru
      _
    // Predicated region
    $region22: #{tpu_custom_call.1} parent=1 // pred_check
      _
    $region23: #{tpu_custom_call.1} parent=1 // pred_check_branch
      %42 = sbr.rel (0) target = $region25
    $region24: #{tpu_custom_call.1} parent=1 // pred_region
      %43 = dma.done [#allocation4], 256
    $region25: #{tpu_custom_call.1} parent=1 // pred_fallthru
      _
    // Predicated region
    $region26: #{tpu_custom_call.1} parent=1 // pred_check
      _
    $region27: #{tpu_custom_call.1} parent=1 // pred_check_branch
      %45 = sbr.rel (0) target = $region29
    $region28: #{tpu_custom_call.1} parent=1 // pred_region
      %46 = dma.done [#allocation6], 8192
    $region29: #{tpu_custom_call.1} parent=1 // pred_fallthru
      _
    %v47 = vld [vmem:[#allocation3] sm:$0xff]
    %v48 = vld [vmem:[#allocation3 + $0x8] sm:$0xff]
    %v49 = vld [vmem:[#allocation5] sm:$0xff]
    %v50 = vld [vmem:[#allocation5 + $0x8] sm:$0xff]
    %v51 = vld [vmem:[#allocation5 + $0x10] sm:$0xff]
    %v52 = vld [vmem:[#allocation5 + $0x18] sm:$0xff]
    %v53 = vld [vmem:[#allocation5 + $0x20] sm:$0xff]
    %v54 = vld [vmem:[#allocation5 + $0x28] sm:$0xff]
    %v55 = vld [vmem:[#allocation5 + $0x30] sm:$0xff]
    %v56 = vld [vmem:[#allocation5 + $0x38] sm:$0xff]
    %v57 = vld [vmem:[#allocation5 + $0x40] sm:$0xff]
    %v58 = vld [vmem:[#allocation5 + $0x48] sm:$0xff]
    %v59 = vld [vmem:[#allocation5 + $0x50] sm:$0xff]
    %v60 = vld [vmem:[#allocation5 + $0x58] sm:$0xff]
    %v61 = vld [vmem:[#allocation5 + $0x60] sm:$0xff]
    %v62 = vld [vmem:[#allocation5 + $0x68] sm:$0xff]
    %v63 = vld [vmem:[#allocation5 + $0x70] sm:$0xff]
    %v64 = vld [vmem:[#allocation5 + $0x78] sm:$0xff]
    %v65 = vld [vmem:[#allocation5 + $0x80] sm:$0xff]
    %v66 = vld [vmem:[#allocation5 + $0x88] sm:$0xff]
    %v67 = vld [vmem:[#allocation5 + $0x90] sm:$0xff]
    %v68 = vld [vmem:[#allocation5 + $0x98] sm:$0xff]
    %v69 = vld [vmem:[#allocation5 + $0xa0] sm:$0xff]
    %v70 = vld [vmem:[#allocation5 + $0xa8] sm:$0xff]
    %v71 = vld [vmem:[#allocation5 + $0xb0] sm:$0xff]
    %v72 = vld [vmem:[#allocation5 + $0xb8] sm:$0xff]
    %v73 = vld [vmem:[#allocation5 + $0xc0] sm:$0xff]
    %v74 = vld [vmem:[#allocation5 + $0xc8] sm:$0xff]
    %v75 = vld [vmem:[#allocation5 + $0xd0] sm:$0xff]
    %v76 = vld [vmem:[#allocation5 + $0xd8] sm:$0xff]
    %v77 = vld [vmem:[#allocation5 + $0xe0] sm:$0xff]
    %v78 = vld [vmem:[#allocation5 + $0xe8] sm:$0xff]
    %v79 = vld [vmem:[#allocation5 + $0xf0] sm:$0xff]
    %v80 = vld [vmem:[#allocation5 + $0xf8] sm:$0xff]
    %v81 = vld [vmem:[#allocation5 + $0x100] sm:$0xff]
    %v82 = vld [vmem:[#allocation5 + $0x108] sm:$0xff]
    %v83 = vld [vmem:[#allocation5 + $0x110] sm:$0xff]
    %v84 = vld [vmem:[#allocation5 + $0x118] sm:$0xff]
    %v85 = vld [vmem:[#allocation5 + $0x120] sm:$0xff]
    %v86 = vld [vmem:[#allocation5 + $0x128] sm:$0xff]
    %v87 = vld [vmem:[#allocation5 + $0x130] sm:$0xff]
    %v88 = vld [vmem:[#allocation5 + $0x138] sm:$0xff]
    %v89 = vld [vmem:[#allocation5 + $0x140] sm:$0xff]
    %v90 = vld [vmem:[#allocation5 + $0x148] sm:$0xff]
    %v91 = vld [vmem:[#allocation5 + $0x150] sm:$0xff]
    %v92 = vld [vmem:[#allocation5 + $0x158] sm:$0xff]
    %v93 = vld [vmem:[#allocation5 + $0x160] sm:$0xff]
    %v94 = vld [vmem:[#allocation5 + $0x168] sm:$0xff]
    %v95 = vld [vmem:[#allocation5 + $0x170] sm:$0xff]
    %v96 = vld [vmem:[#allocation5 + $0x178] sm:$0xff]
    %v97 = vld [vmem:[#allocation5 + $0x180] sm:$0xff]
    %v98 = vld [vmem:[#allocation5 + $0x188] sm:$0xff]
    %v99 = vld [vmem:[#allocation5 + $0x190] sm:$0xff]
    %v100 = vld [vmem:[#allocation5 + $0x198] sm:$0xff]
    %v101 = vld [vmem:[#allocation5 + $0x1a0] sm:$0xff]
    %v102 = vld [vmem:[#allocation5 + $0x1a8] sm:$0xff]
    %v103 = vld [vmem:[#allocation5 + $0x1b0] sm:$0xff]
    %v104 = vld [vmem:[#allocation5 + $0x1b8] sm:$0xff]
    %v105 = vld [vmem:[#allocation5 + $0x1c0] sm:$0xff]
    %v106 = vld [vmem:[#allocation5 + $0x1c8] sm:$0xff]
    %v107 = vld [vmem:[#allocation5 + $0x1d0] sm:$0xff]
    %v108 = vld [vmem:[#allocation5 + $0x1d8] sm:$0xff]
    %v109 = vld [vmem:[#allocation5 + $0x1e0] sm:$0xff]
    %v110 = vld [vmem:[#allocation5 + $0x1e8] sm:$0xff]
    %v111 = vld [vmem:[#allocation5 + $0x1f0] sm:$0xff]
    %v112 = vld [vmem:[#allocation5 + $0x1f8] sm:$0xff]
    %v113 = vld [vmem:[%s2] sm:$0x3]
    %v115 = vlaneseq
    %v116 = vshrl.u32 %v115, 7
    %v117 = vsub.s32 0, %v116
    %v118 = vrot.slane %v113, %v117
    %v119 = vlaneseq
    %v120 = vshrl.u32 %v119, 7
    %v121 = vsub.s32 1, %v120
    %v122 = vrot.slane %v113, %v121
    %125 = vmatprep.subr.mxu0 %v50
    %126 = vmatpush1.xpose.msra.mxu0 %v49
    %127 = vmatprep.subr.mxu0 %v52
    %128 = vmatpush1.xpose.msra.mxu0 %v51
    %129 = vmatprep.subr.mxu0 %v54
    %130 = vmatpush1.xpose.msra.mxu0 %v53
    %131 = vmatprep.subr.mxu0 %v56
    %132 = vmatpush1.xpose.msra.mxu0 %v55
    %133 = vmatprep.subr.mxu0 %v58
    %134 = vmatpush1.xpose.msra.mxu0 %v57
    %135 = vmatprep.subr.mxu0 %v60
    %136 = vmatpush1.xpose.msra.mxu0 %v59
    %137 = vmatprep.subr.mxu0 %v62
    %138 = vmatpush1.xpose.msra.mxu0 %v61
    %139 = vmatprep.subr.mxu0 %v64
    %140 = vmatpush1.xpose.msra.mxu0 %v63
    %141 = vmatprep.subr.mxu0 %v66
    %142 = vmatpush1.xpose.msra.mxu0 %v65
    %143 = vmatprep.subr.mxu0 %v68
    %144 = vmatpush1.xpose.msra.mxu0 %v67
    %145 = vmatprep.subr.mxu0 %v70
    %146 = vmatpush1.xpose.msra.mxu0 %v69
    %147 = vmatprep.subr.mxu0 %v72
    %148 = vmatpush1.xpose.msra.mxu0 %v71
    %149 = vmatprep.subr.mxu0 %v74
    %150 = vmatpush1.xpose.msra.mxu0 %v73
    %151 = vmatprep.subr.mxu0 %v76
    %152 = vmatpush1.xpose.msra.mxu0 %v75
    %153 = vmatprep.subr.mxu0 %v78
    %154 = vmatpush1.xpose.msra.mxu0 %v77
    %155 = vmatprep.subr.mxu0 %v80
    %156 = vmatpush1.xpose.msra.mxu0 %v79
    %157 = vmatprep.subr.mxu0 %v82
    %158 = vmatpush1.xpose.msra.mxu0 %v81
    %159 = vmatprep.subr.mxu0 %v84
    %160 = vmatpush1.xpose.msra.mxu0 %v83
    %161 = vmatprep.subr.mxu0 %v86
    %162 = vmatpush1.xpose.msra.mxu0 %v85
    %163 = vmatprep.subr.mxu0 %v88
    %164 = vmatpush1.xpose.msra.mxu0 %v87
    %165 = vmatprep.subr.mxu0 %v90
    %166 = vmatpush1.xpose.msra.mxu0 %v89
    %167 = vmatprep.subr.mxu0 %v92
    %168 = vmatpush1.xpose.msra.mxu0 %v91
    %169 = vmatprep.subr.mxu0 %v94
    %170 = vmatpush1.xpose.msra.mxu0 %v93
    %171 = vmatprep.subr.mxu0 %v96
    %172 = vmatpush1.xpose.msra.mxu0 %v95
    %173 = vmatprep.subr.mxu0 %v98
    %174 = vmatpush1.xpose.msra.mxu0 %v97
    %175 = vmatprep.subr.mxu0 %v100
    %176 = vmatpush1.xpose.msra.mxu0 %v99
    %177 = vmatprep.subr.mxu0 %v102
    %178 = vmatpush1.xpose.msra.mxu0 %v101
    %179 = vmatprep.subr.mxu0 %v104
    %180 = vmatpush1.xpose.msra.mxu0 %v103
    %181 = vmatprep.subr.mxu0 %v106
    %182 = vmatpush1.xpose.msra.mxu0 %v105
    %183 = vmatprep.subr.mxu0 %v108
    %184 = vmatpush1.xpose.msra.mxu0 %v107
    %185 = vmatprep.subr.mxu0 %v110
    %186 = vmatpush1.xpose.msra.mxu0 %v109
    %187 = vmatprep.subr.mxu0 %v112
    %188 = vmatpush1.xpose.msra.mxu0 %v111
    %189 = vmatprep.mubr.f32.mxu0 %v48
    %190 = vmatmul.mubr.f32.gmra.mrb[0].mxu0 %v47
    %v191 = vpop.f32.mrb[0].mxu0
    %v192 = vadd.f32 %v118, %v191
    %v193 = vpop.f32.mrb[0].mxu0
    %v194 = vadd.f32 %v122, %v193
    %195 = vdwg.mxu0
    %v196 = vmax.f32 %v192, 0.0
    %v197 = vmax.f32 %v194, 0.0
    %v198 = vld [vmem:[%s3] sm:$0x3]
    %v200 = vlaneseq
    %v201 = vshrl.u32 %v200, 7
    %v202 = vsub.s32 0, %v201
    %v203 = vrot.slane %v198, %v202
    %v204 = vlaneseq
    %v205 = vshrl.u32 %v204, 7
    %v206 = vsub.s32 1, %v205
    %v207 = vrot.slane %v198, %v206
    %v210 = vmul.f32 %v196, %v203
    %v211 = vmul.f32 %v197, %v207
    %v212 = vadd.f32 %v210, %v211
    %213 = vadd.xlane.f32.xlu0 %v212
    %v214 = vpop.xlane.xlu0 %213
    %s215 = sld [smem:[#allocation2]]
    %v216 = vstv %s215
    %v217 = vadd.f32 %v214, %v216
    %vm218 = vcmask 7168
    %219 = vst.msk [vmem:[%s5] sm:$0xff] %vm218, %v217
    // Predicated region
    $region30: #{tpu_custom_call.1} parent=1 // pred_check
      _
    $region31: #{tpu_custom_call.1} parent=1 // pred_check_branch
      %221 = sbr.rel (0) target = $region33
    $region32: #{tpu_custom_call.1} parent=1 // pred_region
      _
    $region33: #{tpu_custom_call.1} parent=1 // pred_fallthru
      _
    // Predicated region
    $region34: #{tpu_custom_call.1} parent=1 // pred_check
      _
    $region35: #{tpu_custom_call.1} parent=1 // pred_check_branch
      %223 = sbr.rel (0) target = $region37
    $region36: #{tpu_custom_call.1} parent=1 // pred_region
      _
    $region37: #{tpu_custom_call.1} parent=1 // pred_fallthru
      _
    %224 = vsyncpa [#allocation4], 1
    %225 = vsyncpa [#allocation6], 1

</llo_original>
